<compile_context>
chip_gen: v7x
topology: tpu7x:2x2x1
jax: 0.10.0
libtpu: 0.0.40
codegen_flags: <defaults>
</compile_context>

<pallas_src>
import functools

import jax
import jax.numpy as jnp
from jax import lax
from jax.experimental import pallas as pl
from jax.experimental.pallas import tpu as pltpu


def _round_up(a: int, b: int) -> int:
    return ((a + b - 1) // b) * b


def _cls_proj_kernel(x_ref, wp_ref, wl_ref, out_ref, proj_ref):
    """Fused: proj = x @ Wp^T (once per m-tile); logits_tile = proj @ Wl_tile^T."""
    # Vocab axis (axis 1) is the inner "arbitrary" loop: compute the projection
    # for this m-tile once and cast once into the compute-dtype scratch.
    @pl.when(pl.program_id(1) == 0)
    def _():
        proj_ref[...] = lax.dot_general(
            x_ref[...],
            wp_ref[...],
            dimension_numbers=(((1,), (1,)), ((), ())),  # contract H with H
            preferred_element_type=jnp.float32,
        ).astype(proj_ref.dtype)

    out_ref[...] = lax.dot_general(
        proj_ref[...],
        wl_ref[...],
        dimension_numbers=(((1,), (1,)), ((), ())),      # contract E with E
        preferred_element_type=jnp.float32,
    ).astype(out_ref.dtype)


def _cls_noproj_kernel(x_ref, wl_ref, out_ref):
    """lm_head only: logits_tile = x @ Wl_tile^T."""
    out_ref[...] = lax.dot_general(
        x_ref[...],
        wl_ref[...],
        dimension_numbers=(((1,), (1,)), ((), ())),
        preferred_element_type=jnp.float32,
    ).astype(out_ref.dtype)


@functools.partial(jax.jit, static_argnames=("block_m", "tile_v"))
def llama_cls_forward(hidden_states, lm_head_w, project_out_w=None, *,
                      block_m=256, tile_v=512):
    """
    hidden_states: [B, S, H]
    lm_head_w:     [V, E]  (PyTorch Linear layout [out, in]); E == H if no project_out
    project_out_w: [E, H]  or None
    returns logits [B, S, V] in hidden_states.dtype
    """
    B, S, H = hidden_states.shape
    V, E_in = lm_head_w.shape
    M = B * S
    dt = hidden_states.dtype
    itm = jnp.dtype(dt).itemsize

    x2d = hidden_states.reshape(M, H)

    # ---- M axis: pad only to a sublane multiple (free when M % 8 == 0),
    #      then tile with a cdiv grid (partial last m-tile is masked on write).
    Mp = _round_up(M, 8)
    if Mp != M:
        x2d = jnp.pad(x2d, ((0, Mp - M), (0, 0)))
    block_m = int(max(8, min(block_m, Mp)))
    block_m = (block_m // 8) * 8
    grid_m = pl.cdiv(Mp, block_m)

    # ---- V axis: NO padding.  cdiv grid; last vocab tile is partial and its
    #      out-of-range columns are dropped by the masked output writeback.
    if V < 128:
        tile_v = V                       # single full-extent block (always legal)
    else:
        tile_v_max = (V // 128) * 128    # keep block <= array extent
        tile_v = int(max(128, min(tile_v, tile_v_max)))
        tile_v = _round_up(tile_v, 128)
        tile_v = min(tile_v, tile_v_max)
    grid_v = pl.cdiv(V, tile_v)

    grid = (grid_m, grid_v)

    if project_out_w is not None:
        E, Hw = project_out_w.shape
        assert Hw == H and E == E_in

        # VMEM footprint (double-buffered inputs/outputs + proj scratch).
        vmem = (2 * block_m * H * itm          # x m-tiles
                + 2 * E * H * itm              # Wp (resident; fetched once)
                + 2 * tile_v * E * itm         # Wl vocab tiles
                + 2 * block_m * tile_v * itm   # output tiles
                + block_m * E * itm)           # proj scratch
        vmem_limit = int(min(max(2 * vmem + (8 << 20), 32 << 20), 64 << 20))

        cost = pl.CostEstimate(
            flops=2 * M * H * E + 2 * M * E * V,
            transcendentals=0,
            bytes_accessed=(M * H + E * H + grid_m * V * E) * itm + M * V * itm,
        )

        out2d = pl.pallas_call(
            _cls_proj_kernel,
            out_shape=jax.ShapeDtypeStruct((Mp, V), dt),
            grid_spec=pltpu.PrefetchScalarGridSpec(
                num_scalar_prefetch=0,
                grid=grid,
                in_specs=[
                    pl.BlockSpec((block_m, H), lambda i, j: (i, 0)),   # x m-tile
                    pl.BlockSpec((E, H), lambda i, j: (0, 0)),         # Wp [out, in]
                    pl.BlockSpec((tile_v, E), lambda i, j: (j, 0)),    # Wl vocab tile
                ],
                out_specs=pl.BlockSpec((block_m, tile_v), lambda i, j: (i, j)),
                scratch_shapes=[pltpu.VMEM((block_m, E), dt)],
            ),
            compiler_params=pltpu.CompilerParams(
                dimension_semantics=("parallel", "arbitrary"),
                vmem_limit_bytes=vmem_limit,
            ),
            cost_estimate=cost,
        )(x2d, project_out_w, lm_head_w)
    else:
        assert E_in == H
        vmem = (2 * block_m * H * itm
                + 2 * tile_v * H * itm
                + 2 * block_m * tile_v * itm)
        vmem_limit = int(min(max(2 * vmem + (8 << 20), 32 << 20), 64 << 20))

        cost = pl.CostEstimate(
            flops=2 * M * H * V,
            transcendentals=0,
            bytes_accessed=(M * H + grid_m * V * H) * itm + M * V * itm,
        )

        out2d = pl.pallas_call(
            _cls_noproj_kernel,
            out_shape=jax.ShapeDtypeStruct((Mp, V), dt),
            grid_spec=pltpu.PrefetchScalarGridSpec(
                num_scalar_prefetch=0,
                grid=grid,
                in_specs=[
                    pl.BlockSpec((block_m, H), lambda i, j: (i, 0)),
                    pl.BlockSpec((tile_v, H), lambda i, j: (j, 0)),
                ],
                out_specs=pl.BlockSpec((block_m, tile_v), lambda i, j: (i, j)),
            ),
            compiler_params=pltpu.CompilerParams(
                dimension_semantics=("parallel", "parallel"),
                vmem_limit_bytes=vmem_limit,
            ),
            cost_estimate=cost,
        )(x2d, lm_head_w)

    if Mp != M:
        out2d = out2d[:M]
    return out2d.reshape(B, S, V)


def _ref_forward(hidden_states, lm_head_w, project_out_w=None):
    """Pure-JAX reference mirroring the kernel's dtype path (f32 accumulation)."""
    B, S, H = hidden_states.shape
    x = hidden_states.reshape(B * S, H).astype(jnp.float32)
    if project_out_w is not None:
        proj = lax.dot_general(x, project_out_w.astype(jnp.float32),
                               dimension_numbers=(((1,), (1,)), ((), ())))
        x = proj.astype(hidden_states.dtype).astype(jnp.float32)
    out = lax.dot_general(x, lm_head_w.astype(jnp.float32),
                          dimension_numbers=(((1,), (1,)), ((), ())))
    V = lm_head_w.shape[0]
    return out.astype(hidden_states.dtype).reshape(B, S, V)


if __name__ == "__main__":
    # Small shapes that still exercise both grid axes and partial tiles:
    #   M = B*S = 48 -> 3 m-tiles with block_m=16 ; V=1024 -> 2 vocab tiles of 512.
    B, S, H, E, V = 2, 24, 128, 256, 1024

    key = jax.random.PRNGKey(0)
    k_x, k_wp, k_wl, k_wl2 = jax.random.split(key, 4)

    # bf16 weights + activations with f32 MXU accumulation (real-model datapath).
    hidden_states = jax.random.normal(k_x, (B, S, H), dtype=jnp.float32).astype(jnp.bfloat16)
    project_out_w = (jax.random.normal(k_wp, (E, H), dtype=jnp.float32) * 0.02).astype(jnp.bfloat16)
    lm_head_w = (jax.random.normal(k_wl, (V, E), dtype=jnp.float32) * 0.02).astype(jnp.bfloat16)

    logits = llama_cls_forward(hidden_states, lm_head_w, project_out_w,
                               block_m=16, tile_v=512)
    logits = jax.block_until_ready(logits)
    assert logits.shape == (B, S, V)

    ref = _ref_forward(hidden_states, lm_head_w, project_out_w)
    assert jnp.allclose(logits.astype(jnp.float32), ref.astype(jnp.float32),
                        atol=2e-2, rtol=2e-2), "mismatch vs reference (proj path)"

    # project_out=None path, with a vocab size that is NOT a multiple of tile_v
    # (partial last vocab tile) and a block_m that leaves a partial last m-tile.
    V2 = 1000
    lm_head_w2 = (jax.random.normal(k_wl2, (V2, H), dtype=jnp.float32) * 0.02).astype(jnp.bfloat16)
    logits2 = jax.block_until_ready(
        llama_cls_forward(hidden_states, lm_head_w2, None, block_m=32, tile_v=512)
    )
    assert logits2.shape == (B, S, V2)
    ref2 = _ref_forward(hidden_states, lm_head_w2, None)
    assert jnp.allclose(logits2.astype(jnp.float32), ref2.astype(jnp.float32),
                        atol=2e-2, rtol=2e-2), "mismatch vs reference (no-proj path)"

    print("KERNEL_OK")
</pallas_src>

<mosaic_0001>
module attributes {stable_mosaic.version = 11 : i64} {
  func.func @_cls_proj_kernel(%arg0: i32, %arg1: i32, %arg2: memref<16x128xbf16, #tpu.memory_space<vmem>>, %arg3: memref<256x128xbf16, #tpu.memory_space<vmem>>, %arg4: memref<512x256xbf16, #tpu.memory_space<vmem>>, %arg5: memref<16x512xbf16, #tpu.memory_space<vmem>>, %arg6: memref<16x256xbf16, #tpu.memory_space<vmem>>) attributes {dimension_semantics = [#tpu.dimension_semantics<parallel>, #tpu.dimension_semantics<arbitrary>], iteration_bounds = array<i64: 3, 2>, scalar_prefetch = 0 : i64, scratch_operands = 1 : i64, tpu.core_type = #tpu.core_type<tc>, window_params = [{transform_indices = @transform_0, window_bounds = array<i64: 16, 128>}, {pipeline_mode = #tpu.pipeline_mode<synchronous>, transform_indices = @transform_1, window_bounds = array<i64: 256, 128>}, {transform_indices = @transform_2, window_bounds = array<i64: 512, 256>}, {transform_indices = @transform_3, window_bounds = array<i64: 16, 512>}]} {
    %c0_i32 = arith.constant 0 : i32
    %0 = arith.cmpi eq, %arg1, %c0_i32 : i32
    %1 = arith.extui %0 : i1 to i32
    %c0_i32_0 = arith.constant 0 : i32
    %2 = arith.cmpi ne, %1, %c0_i32_0 : i32
    scf.if %2 {
      %c0_6 = arith.constant 0 : index
      %c0_7 = arith.constant 0 : index
      %8 = vector.load %arg2[%c0_6, %c0_7] : memref<16x128xbf16, #tpu.memory_space<vmem>>, vector<16x128xbf16>
      %c0_8 = arith.constant 0 : index
      %c0_9 = arith.constant 0 : index
      %9 = vector.load %arg3[%c0_8, %c0_9] : memref<256x128xbf16, #tpu.memory_space<vmem>>, vector<256x128xbf16>
      %cst_10 = arith.constant dense<0.000000e+00> : vector<16x256xf32>
      %10 = tpu.matmul %8, %9, %cst_10 {dimension_numbers = #tpu.dot_dimension_numbers<[1], [1], [0], [0], [0, 0, 1, 0], [], []>} : vector<16x128xbf16>, vector<256x128xbf16>, vector<16x256xf32> -> vector<16x256xf32>
      %11 = arith.truncf %10 : vector<16x256xf32> to vector<16x256xbf16>
      %c0_11 = arith.constant 0 : index
      %c0_12 = arith.constant 0 : index
      %12 = vector.load %arg6[%c0_11, %c0_12] : memref<16x256xbf16, #tpu.memory_space<vmem>>, vector<16x256xbf16>
      tpu.vector_store %arg6[%c0_11, %c0_12], %11 {strides = array<i32>} : memref<16x256xbf16, #tpu.memory_space<vmem>>, vector<16x256xbf16>,
    } else {
    }
    %c0 = arith.constant 0 : index
    %c0_1 = arith.constant 0 : index
    %3 = vector.load %arg6[%c0, %c0_1] : memref<16x256xbf16, #tpu.memory_space<vmem>>, vector<16x256xbf16>
    %c0_2 = arith.constant 0 : index
    %c0_3 = arith.constant 0 : index
    %4 = vector.load %arg4[%c0_2, %c0_3] : memref<512x256xbf16, #tpu.memory_space<vmem>>, vector<512x256xbf16>
    %cst = arith.constant dense<0.000000e+00> : vector<16x512xf32>
    %5 = tpu.matmul %3, %4, %cst {dimension_numbers = #tpu.dot_dimension_numbers<[1], [1], [0], [0], [0, 0, 1, 0], [], []>} : vector<16x256xbf16>, vector<512x256xbf16>, vector<16x512xf32> -> vector<16x512xf32>
    %6 = arith.truncf %5 : vector<16x512xf32> to vector<16x512xbf16>
    %c0_4 = arith.constant 0 : index
    %c0_5 = arith.constant 0 : index
    %7 = vector.load %arg5[%c0_4, %c0_5] : memref<16x512xbf16, #tpu.memory_space<vmem>>, vector<16x512xbf16>
    tpu.vector_store %arg5[%c0_4, %c0_5], %6 {strides = array<i32>} : memref<16x512xbf16, #tpu.memory_space<vmem>>, vector<16x512xbf16>,
    return
  }
  func.func @transform_0(%arg0: i32, %arg1: i32) -> (i32, i32) {
    %c0_i32 = arith.constant 0 : i32
    %c0_i32_0 = arith.constant 0 : i32
    return %arg0, %c0_i32 : i32, i32
  }
  func.func @transform_1(%arg0: i32, %arg1: i32) -> (i32, i32) {
    %c0_i32 = arith.constant 0 : i32
    %c0_i32_0 = arith.constant 0 : i32
    %c0_i32_1 = arith.constant 0 : i32
    return %c0_i32, %c0_i32_0 : i32, i32
  }
  func.func @transform_2(%arg0: i32, %arg1: i32) -> (i32, i32) {
    %c0_i32 = arith.constant 0 : i32
    %c0_i32_0 = arith.constant 0 : i32
    return %arg1, %c0_i32 : i32, i32
  }
  func.func @transform_3(%arg0: i32, %arg1: i32) -> (i32, i32) {
    %c0_i32 = arith.constant 0 : i32
    return %arg0, %arg1 : i32, i32
  }
}

</mosaic_0001>

<llo_original>
// kernel: llama_cls_forward.1
$region0: #{llama_cls_forward.1}
  #allocation0 [shape = 'u32[]', space=smem, size = 0x4, offset = 0x4, fixed_abs, tag = 'smem constant byte address 0x4 - core index']
  #allocation1 [shape = 'u32[144,128]{1,0:T(1,128)}', space=vmem, size = 0x12000, scoped, tag = 'internal scratch']
  #allocation2 [shape = 'bf16[16,256]{1,0:T(16,128)(2,1)}', space=vmem, size = 0x2000, scoped, tag = 'scratch operand']
  %s0 = inlined_call_operand.hbm [shape: bf16[48,128], index: 0, kind: input, shape index: {}]
  %s1 = inlined_call_operand.hbm [shape: bf16[256,128], index: 1, kind: input, shape index: {}]
  %s2 = inlined_call_operand.hbm [shape: bf16[1024,256], index: 2, kind: input, shape index: {}]
  %s3 = inlined_call_operand.hbm [shape: bf16[48,1024], index: 3, kind: output, shape index: {}]
  %s4 = sld [smem:[#allocation0]]
  $region61: #{llama_cls_forward.1} parent=0
    _
  %s6 = ssub.s32 1, %s4
  %s7 = scalar_select 0, %s6, %s4
  $region1: #{llama_cls_forward.1} parent=0
    #allocation3 [shape = 'u8[8192]{0}', space=vmem, size = 0x2000, scoped, tag = 'input window, operand 0']
    #allocation4 [shape = 's32[2]{0}', space=sflag, size = 0x8, scoped, tag = 'scoped memory for llama_cls_forward.1']
    #allocation5 [shape = 's32[2]{0}', space=sflag, size = 0x8, scoped, tag = 'scoped memory for llama_cls_forward.1']
    #allocation6 [shape = 'u8[65536]{0}', space=vmem, size = 0x10000, scoped, tag = 'input window, operand 1, single buffered']
    #allocation7 [shape = 's32[1]{0}', space=sflag, size = 0x4, scoped, tag = 'scoped memory for llama_cls_forward.1']
    #allocation8 [shape = 'u8[524288]{0}', space=vmem, size = 0x80000, scoped, tag = 'input window, operand 2']
    #allocation9 [shape = 'u8[32768]{0}', space=vmem, size = 0x8000, scoped, tag = 'output window, operand 0']
    %8 = vsyncpa [#allocation4], 0
    %s9 = scalar_lea.sflag [#allocation4], 1
    %10 = vsyncpa %s9, 0
    %11 = vsyncpa [#allocation7], 0
    %12 = vsyncpa [#allocation5], 0
    %s13 = scalar_lea.sflag [#allocation5], 1
    %14 = vsyncpa %s13, 0
    loop: start=0, step=1, limit=8
    $region2: #{llama_cls_forward.1} parent=1 // loop_pre_header
      _
    $region3: #{llama_cls_forward.1} parent=1 // loop_header
      %s16 = sphi 0, %s20
      %p17 = scmp.ge.s32.totalorder %s16, 8
      %s23 = sphi 0, %s35
      %s24 = sphi 0, %s31
      %s25 = sphi 0, %s23
      %s26 = sphi 0, %s24
      %s27 = sphi 0, %s25
      %s28 = sphi 0, %s26
      %s38 = sphi 0, %s40
      %s41 = sphi 0, %s38
      %s42 = sphi 0, %s41
      %s58 = sphi 0, %s42
      %s62 = sphi 0, %s62
      %s64 = sphi 0, %s62
      %s65 = sphi 0, %s64
      %s79 = sphi 0, %s65
      %s85 = sphi 0, %s87
      %s88 = sphi 0, %s85
      %s89 = sphi 0, %s88
      %s105 = sphi 0, %s89
      %s113 = sphi 0, %s115
      %s116 = sphi 0, %s113
      %s117 = sphi 0, %s116
      %s133 = sphi 0, %s117
    $region4: #{llama_cls_forward.1} parent=1 // loop_header_branch
      %19 = sbr.rel (%p17) target = $region8
    $region5: #{llama_cls_forward.1} parent=1 // loop_body
      %s21 = ssub.s32 %s16, 1
      %s22 = ssub.s32 %s16, 2
      %s29 = sadd.s32 1, %s24
      %p30 = scmp.ge.s32.totalorder %s29, 2
      %s31 = scalar_select %p30, 0, %s29
      %s32 = sadd.s32 1, %s23
      %s33 = scalar_select %p30, %s32, %s23
      %p34 = scmp.ge.s32.totalorder %s33, 3
      %s35 = scalar_select %p34, 0, %s33
      %s36 = ssub.s32 %s23, %s35
      %p37 = scmp.eq.s32.totalorder %s36, 0
      %s39 = sadd.s32 %s38, 1
      %s40 = scalar_select %p37, %s38, %s39
      %p43 = pneg %p37
      %p44 = scmp.eq.s32.totalorder %s16, 5
      %p45 = por %p43, %p44
      %p46 = scmp.ne.s32.totalorder %s38, %s41
      %p47 = scmp.eq.s32.totalorder %s16, 0
      %p48 = por %p46, %p47
      %p49 = scmp.ne.s32.totalorder %s38, %s41
      %p50 = scmp.eq.s32.totalorder %s21, 5
      %p51 = por %p49, %p50
      %p52 = scmp.ne.s32.totalorder %s41, %s42
      %p53 = scmp.eq.s32.totalorder %s21, 0
      %p54 = por %p52, %p53
      %p55 = scmp.ne.s32.totalorder %s41, %s42
      %p56 = scmp.eq.s32.totalorder %s22, 5
      %p57 = por %p55, %p56
      %p59 = scmp.ne.s32.totalorder %s42, %s58
      %p60 = scmp.eq.s32.totalorder %s22, 0
      %p61 = por %p59, %p60
      %s63 = sadd.s32 %s62, 1
      %p66 = scmp.eq.s32.totalorder %s16, 5
      %p67 = scmp.ne.s32.totalorder %s62, %s64
      %p68 = scmp.eq.s32.totalorder %s16, 0
      %p69 = por %p67, %p68
      %p70 = scmp.ne.s32.totalorder %s62, %s64
      %p71 = scmp.eq.s32.totalorder %s21, 5
      %p72 = por %p70, %p71
      %p73 = scmp.ne.s32.totalorder %s64, %s65
      %p74 = scmp.eq.s32.totalorder %s21, 0
      %p75 = por %p73, %p74
      %p76 = scmp.ne.s32.totalorder %s64, %s65
      %p77 = scmp.eq.s32.totalorder %s22, 5
      %p78 = por %p76, %p77
      %p80 = scmp.ne.s32.totalorder %s65, %s79
      %p81 = scmp.eq.s32.totalorder %s22, 0
      %p82 = por %p80, %p81
      %s83 = ssub.s32 %s24, %s31
      %p84 = scmp.eq.s32.totalorder %s83, 0
      %s86 = sadd.s32 %s85, 1
      %s87 = scalar_select %p84, %s85, %s86
      %p90 = pneg %p84
      %p91 = scmp.eq.s32.totalorder %s16, 5
      %p92 = por %p90, %p91
      %p93 = scmp.ne.s32.totalorder %s85, %s88
      %p94 = scmp.eq.s32.totalorder %s16, 0
      %p95 = por %p93, %p94
      %p96 = scmp.ne.s32.totalorder %s85, %s88
      %p97 = scmp.eq.s32.totalorder %s21, 5
      %p98 = por %p96, %p97
      %p99 = scmp.ne.s32.totalorder %s88, %s89
      %p100 = scmp.eq.s32.totalorder %s21, 0
      %p101 = por %p99, %p100
      %p102 = scmp.ne.s32.totalorder %s88, %s89
      %p103 = scmp.eq.s32.totalorder %s22, 5
      %p104 = por %p102, %p103
      %p106 = scmp.ne.s32.totalorder %s89, %s105
      %p107 = scmp.eq.s32.totalorder %s22, 0
      %p108 = por %p106, %p107
      %s109 = ssub.s32 %s23, %s35
      %s110 = ssub.s32 %s24, %s31
      %s111 = sor.u32 %s109, %s110
      %p112 = scmp.eq.s32.totalorder %s111, 0
      %s114 = sadd.s32 %s113, 1
      %s115 = scalar_select %p112, %s113, %s114
      %p118 = pneg %p112
      %p119 = scmp.eq.s32.totalorder %s16, 5
      %p120 = por %p118, %p119
      %p121 = scmp.ne.s32.totalorder %s113, %s116
      %p122 = scmp.eq.s32.totalorder %s16, 0
      %p123 = por %p121, %p122
      %p124 = scmp.ne.s32.totalorder %s113, %s116
      %p125 = scmp.eq.s32.totalorder %s21, 5
      %p126 = por %p124, %p125
      %p127 = scmp.ne.s32.totalorder %s116, %s117
      %p128 = scmp.eq.s32.totalorder %s21, 0
      %p129 = por %p127, %p128
      %p130 = scmp.ne.s32.totalorder %s116, %s117
      %p131 = scmp.eq.s32.totalorder %s22, 5
      %p132 = por %p130, %p131
      %p134 = scmp.ne.s32.totalorder %s117, %s133
      %p135 = scmp.eq.s32.totalorder %s22, 0
      %p136 = por %p134, %p135
      %p137 = scmp.le.s32.totalorder 1, %s16
      %p138 = scmp.lt.s32.totalorder %s16, 7
      %p139 = pnand %p137, %p138
      %p140 = pneg %p139
      // Predicated region
      $region9: #{llama_cls_forward.1} parent=5 // pred_check
        _
      $region10: #{llama_cls_forward.1} parent=5 // pred_check_branch
        %142 = sbr.rel (%p139) target = $region12
      $region11: #{llama_cls_forward.1} parent=5 // pred_region
        %s143 = ssub.s32 %s16, 1
        // Predicated region
        $region13: #{llama_cls_forward.1} parent=11 // pred_check
          %p144 = pneg %p75
        $region14: #{llama_cls_forward.1} parent=11 // pred_check_branch
          %146 = sbr.rel (%p144) target = $region16
        $region15: #{llama_cls_forward.1} parent=11 // pred_region
          %s148 = ssub.s32 2048, 2048
          %149 = vsyncadd [#allocation7], %s148
          %s150 = sshll.u32 [#allocation6], 4
          %s151 = int_to_ptr.vmem [resolvable:$true] %s150
          %156 = dma.hbm_to_vmem [thread:$0]  %s1, 2048, %s151, [#allocation7], 64, 64, 4
        $region16: #{llama_cls_forward.1} parent=11 // pred_fallthru
          _
      $region12: #{llama_cls_forward.1} parent=5 // pred_fallthru
        _
      %p157 = scmp.lt.s32.totalorder %s16, 6
      // Predicated region
      $region17: #{llama_cls_forward.1} parent=5 // pred_check
        %p158 = pneg %p157
      $region18: #{llama_cls_forward.1} parent=5 // pred_check_branch
        %160 = sbr.rel (%p158) target = $region20
      $region19: #{llama_cls_forward.1} parent=5 // pred_region
        // Predicated region
        $region21: #{llama_cls_forward.1} parent=19 // pred_check
          %p161 = pneg %p48
        $region22: #{llama_cls_forward.1} parent=19 // pred_check_branch
          %163 = sbr.rel (%p161) target = $region24
        $region23: #{llama_cls_forward.1} parent=19 // pred_region
          %s164 = sand.u32 %s16, 1
          %s165 = scalar_lea.sflag [#allocation4], %s164
          %s166 = sand.u32 %s38, 1
          %s167 = smul.addr %s166, 8
          %s168 = scalar_lea.vmem [#allocation3], %s167
          %s169 = smul.u32 2, %s23
          %s171 = ssub.s32 128, 128
          %172 = vsyncadd %s165, %s171
          %s173 = smul.addr %s169, 64
          %s174 = scalar_lea.hbm %s0, %s173
          %s175 = sshll.u32 %s168, 4
          %s176 = int_to_ptr.vmem [resolvable:$true] %s175
          %181 = dma.hbm_to_vmem [thread:$0]  %s174, 128, %s176, %s165, 64, 64, 4
        $region24: #{llama_cls_forward.1} parent=19 // pred_fallthru
          _
        // Predicated region
        $region25: #{llama_cls_forward.1} parent=19 // pred_check
          %p182 = pneg %p95
        $region26: #{llama_cls_forward.1} parent=19 // pred_check_branch
          %184 = sbr.rel (%p182) target = $region28
        $region27: #{llama_cls_forward.1} parent=19 // pred_region
          %s185 = sand.u32 %s16, 1
          %s186 = scalar_lea.sflag [#allocation4], %s185
          %s187 = sand.u32 %s85, 1
          %s188 = smul.addr %s187, 512
          %s189 = scalar_lea.vmem [#allocation8], %s188
          %s190 = smul.u32 64, %s24
          %s192 = ssub.s32 8192, 8192
          %193 = vsyncadd %s186, %s192
          %s194 = smul.addr %s190, 2
          %s195 = smul.addr %s194, 64
          %s196 = scalar_lea.hbm %s2, %s195
          %s197 = sshll.u32 %s189, 4
          %s198 = int_to_ptr.vmem [resolvable:$true] %s197
          %203 = dma.hbm_to_vmem [thread:$0]  %s196, 8192, %s198, %s186, 128, 128, 8
        $region28: #{llama_cls_forward.1} parent=19 // pred_fallthru
          _
      $region20: #{llama_cls_forward.1} parent=5 // pred_fallthru
        _
      %p204 = scmp.le.s32.totalorder 1, %s16
      %p205 = scmp.lt.s32.totalorder %s16, 7
      %p206 = pnand %p204, %p205
      %p207 = pneg %p206
      // Predicated region
      $region29: #{llama_cls_forward.1} parent=5 // pred_check
        _
      $region30: #{llama_cls_forward.1} parent=5 // pred_check_branch
        %209 = sbr.rel (%p206) target = $region32
      $region31: #{llama_cls_forward.1} parent=5 // pred_region
        %s210 = ssub.s32 %s16, 1
        %s211 = sand.u32 %s21, 1
        %s212 = scalar_lea.sflag [#allocation4], %s211
        %s213 = sand.u32 %s41, 1
        %s214 = smul.addr %s213, 8
        %s215 = scalar_lea.vmem [#allocation3], %s214
        // Predicated region
        $region33: #{llama_cls_forward.1} parent=31 // pred_check
          %p216 = pneg %p54
        $region34: #{llama_cls_forward.1} parent=31 // pred_check_branch
          %218 = sbr.rel (%p216) target = $region36
        $region35: #{llama_cls_forward.1} parent=31 // pred_region
          %219 = dma.done %s212, 128
        $region36: #{llama_cls_forward.1} parent=31 // pred_fallthru
          _
        // Predicated region
        $region37: #{llama_cls_forward.1} parent=31 // pred_check
          %p220 = pneg %p75
        $region38: #{llama_cls_forward.1} parent=31 // pred_check_branch
          %222 = sbr.rel (%p220) target = $region40
        $region39: #{llama_cls_forward.1} parent=31 // pred_region
          %223 = dma.done [#allocation7], 2048
        $region40: #{llama_cls_forward.1} parent=31 // pred_fallthru
          _
        %s224 = sand.u32 %s21, 1
        %s225 = scalar_lea.sflag [#allocation4], %s224
        %s226 = sand.u32 %s88, 1
        %s227 = smul.addr %s226, 512
        %s228 = scalar_lea.vmem [#allocation8], %s227
        // Predicated region
        $region41: #{llama_cls_forward.1} parent=31 // pred_check
          %p229 = pneg %p101
        $region42: #{llama_cls_forward.1} parent=31 // pred_check_branch
          %231 = sbr.rel (%p229) target = $region44
        $region43: #{llama_cls_forward.1} parent=31 // pred_region
          %232 = dma.done %s225, 8192
        $region44: #{llama_cls_forward.1} parent=31 // pred_fallthru
          _
        %s233 = sand.u32 %s21, 1
        %s234 = scalar_lea.sflag [#allocation4], %s233
        %s235 = sand.u32 %s41, 1
        %s236 = smul.addr %s235, 8
        %s237 = scalar_lea.vmem [#allocation3], %s236
        %p238 = pneg %p54
        %p239 = pneg %p51
        %p240 = pneg %p75
        %p241 = pneg %p72
        %s242 = sand.u32 %s21, 1
        %s243 = scalar_lea.sflag [#allocation4], %s242
        %s244 = sand.u32 %s88, 1
        %s245 = smul.addr %s244, 512
        %s246 = scalar_lea.vmem [#allocation8], %s245
        %p247 = pneg %p101
        %p248 = pneg %p98
        %p249 = pneg %p129
        %p250 = pneg %p126
        %s251 = sand.u32 %s116, 1
        %s252 = scalar_lea.sflag [#allocation5], %s251
        %s253 = sand.u32 %s116, 1
        %s254 = smul.addr %s253, 32
        %s255 = scalar_lea.vmem [#allocation9], %s254
        %s256 = smul.u32 2, %s25
        %s257 = smul.u32 64, %s26
        %s258 = smul.u32 2, %s25
        %s259 = smul.u32 4, %s26
        %p261 = scmp.eq.s32.totalorder %s26, 0
        // Predicated region
        $region45: #{llama_cls_forward.1} parent=31 // pred_check
          %p262 = pneg %p261
        $region46: #{llama_cls_forward.1} parent=31 // pred_check_branch
          %264 = sbr.rel (%p262) target = $region48
        $region47: #{llama_cls_forward.1} parent=31 // pred_region
          %v265 = vld [vmem:[%s215] sm:$0xf]
          %v266 = vld [vmem:[%s215 + $0x4] sm:$0xf]
          %v267 = vld [vmem:[#allocation6] sm:$0xf]
          %v268 = vld [vmem:[#allocation6 + $0x4] sm:$0xf]
          %v269 = vld [vmem:[#allocation6 + $0x8] sm:$0xf]
          %v270 = vld [vmem:[#allocation6 + $0xc] sm:$0xf]
          %v271 = vld [vmem:[#allocation6 + $0x10] sm:$0xf]
          %v272 = vld [vmem:[#allocation6 + $0x14] sm:$0xf]
          %v273 = vld [vmem:[#allocation6 + $0x18] sm:$0xf]
          %v274 = vld [vmem:[#allocation6 + $0x1c] sm:$0xf]
          %v275 = vld [vmem:[#allocation6 + $0x20] sm:$0xf]
          %v276 = vld [vmem:[#allocation6 + $0x24] sm:$0xf]
          %v277 = vld [vmem:[#allocation6 + $0x28] sm:$0xf]
          %v278 = vld [vmem:[#allocation6 + $0x2c] sm:$0xf]
          %v279 = vld [vmem:[#allocation6 + $0x30] sm:$0xf]
          %v280 = vld [vmem:[#allocation6 + $0x34] sm:$0xf]
          %v281 = vld [vmem:[#allocation6 + $0x38] sm:$0xf]
          %v282 = vld [vmem:[#allocation6 + $0x3c] sm:$0xf]
          %v283 = vld [vmem:[#allocation6 + $0x40] sm:$0xf]
          %v284 = vld [vmem:[#allocation6 + $0x44] sm:$0xf]
          %v285 = vld [vmem:[#allocation6 + $0x48] sm:$0xf]
          %v286 = vld [vmem:[#allocation6 + $0x4c] sm:$0xf]
          %v287 = vld [vmem:[#allocation6 + $0x50] sm:$0xf]
          %v288 = vld [vmem:[#allocation6 + $0x54] sm:$0xf]
          %v289 = vld [vmem:[#allocation6 + $0x58] sm:$0xf]
          %v290 = vld [vmem:[#allocation6 + $0x5c] sm:$0xf]
          %v291 = vld [vmem:[#allocation6 + $0x60] sm:$0xf]
          %v292 = vld [vmem:[#allocation6 + $0x64] sm:$0xf]
          %v293 = vld [vmem:[#allocation6 + $0x68] sm:$0xf]
          %v294 = vld [vmem:[#allocation6 + $0x6c] sm:$0xf]
          %v295 = vld [vmem:[#allocation6 + $0x70] sm:$0xf]
          %v296 = vld [vmem:[#allocation6 + $0x74] sm:$0xf]
          %v297 = vld [vmem:[#allocation6 + $0x78] sm:$0xf]
          %v298 = vld [vmem:[#allocation6 + $0x7c] sm:$0xf]
          %v301 = vunpack.c.l.b16 %v265
          %v302 = vunpack.c.l.b16 %v266
          %v303 = vpack.c.b16 %v302, %v301
          %v337 = vunpack.c.l.b16 %v267
          %v338 = vunpack.c.l.b16 %v268
          %v339 = vunpack.c.l.b16 %v269
          %v340 = vunpack.c.l.b16 %v270
          %v341 = vunpack.c.l.b16 %v271
          %v342 = vunpack.c.l.b16 %v272
          %v343 = vunpack.c.l.b16 %v273
          %v344 = vunpack.c.l.b16 %v274
          %v345 = vunpack.c.l.b16 %v275
          %v346 = vunpack.c.l.b16 %v276
          %v347 = vunpack.c.l.b16 %v277
          %v348 = vunpack.c.l.b16 %v278
          %v349 = vunpack.c.l.b16 %v279
          %v350 = vunpack.c.l.b16 %v280
          %v351 = vunpack.c.l.b16 %v281
          %v352 = vunpack.c.l.b16 %v282
          %v353 = vunpack.c.l.b16 %v283
          %v354 = vunpack.c.l.b16 %v284
          %v355 = vunpack.c.l.b16 %v285
          %v356 = vunpack.c.l.b16 %v286
          %v357 = vunpack.c.l.b16 %v287
          %v358 = vunpack.c.l.b16 %v288
          %v359 = vunpack.c.l.b16 %v289
          %v360 = vunpack.c.l.b16 %v290
          %v361 = vunpack.c.l.b16 %v291
          %v362 = vunpack.c.l.b16 %v292
          %v363 = vunpack.c.l.b16 %v293
          %v364 = vunpack.c.l.b16 %v294
          %v365 = vunpack.c.l.b16 %v295
          %v366 = vunpack.c.l.b16 %v296
          %v367 = vunpack.c.l.b16 %v297
          %v368 = vunpack.c.l.b16 %v298
          %v369 = vpack.c.b16 %v338, %v337
          %v370 = vpack.c.b16 %v340, %v339
          %v371 = vpack.c.b16 %v342, %v341
          %v372 = vpack.c.b16 %v344, %v343
          %v373 = vpack.c.b16 %v346, %v345
          %v374 = vpack.c.b16 %v348, %v347
          %v375 = vpack.c.b16 %v350, %v349
          %v376 = vpack.c.b16 %v352, %v351
          %v377 = vpack.c.b16 %v354, %v353
          %v378 = vpack.c.b16 %v356, %v355
          %v379 = vpack.c.b16 %v358, %v357
          %v380 = vpack.c.b16 %v360, %v359
          %v381 = vpack.c.b16 %v362, %v361
          %v382 = vpack.c.b16 %v364, %v363
          %v383 = vpack.c.b16 %v366, %v365
          %v384 = vpack.c.b16 %v368, %v367
          %401 = vmatprep.subr.bf16.mxu0 0
          %402 = vmatpush1.bf16.xpose.msra.mxu0 %v369
          %403 = vmatprep.subr.bf16.mxu0 0
          %404 = vmatpush1.bf16.xpose.msra.mxu0 %v370
          %405 = vmatprep.subr.bf16.mxu0 0
          %406 = vmatpush1.bf16.xpose.msra.mxu0 %v371
          %407 = vmatprep.subr.bf16.mxu0 0
          %408 = vmatpush1.bf16.xpose.msra.mxu0 %v372
          %409 = vmatprep.subr.bf16.mxu0 0
          %410 = vmatpush1.bf16.xpose.msra.mxu0 %v373
          %411 = vmatprep.subr.bf16.mxu0 0
          %412 = vmatpush1.bf16.xpose.msra.mxu0 %v374
          %413 = vmatprep.subr.bf16.mxu0 0
          %414 = vmatpush1.bf16.xpose.msra.mxu0 %v375
          %415 = vmatprep.subr.bf16.mxu0 0
          %416 = vmatpush1.bf16.xpose.msra.mxu0 %v376
          %417 = vmatprep.subr.bf16.mxu0 0
          %418 = vmatpush1.bf16.xpose.msra.mxu0 %v377
          %419 = vmatprep.subr.bf16.mxu0 0
          %420 = vmatpush1.bf16.xpose.msra.mxu0 %v378
          %421 = vmatprep.subr.bf16.mxu0 0
          %422 = vmatpush1.bf16.xpose.msra.mxu0 %v379
          %423 = vmatprep.subr.bf16.mxu0 0
          %424 = vmatpush1.bf16.xpose.msra.mxu0 %v380
          %425 = vmatprep.subr.bf16.mxu0 0
          %426 = vmatpush1.bf16.xpose.msra.mxu0 %v381
          %427 = vmatprep.subr.bf16.mxu0 0
          %428 = vmatpush1.bf16.xpose.msra.mxu0 %v382
          %429 = vmatprep.subr.bf16.mxu0 0
          %430 = vmatpush1.bf16.xpose.msra.mxu0 %v383
          %431 = vmatprep.subr.bf16.mxu0 0
          %432 = vmatpush1.bf16.xpose.msra.mxu0 %v384
          %433 = vmatprep.mubr.bf16.mxu0 0
          %434 = vmatmul.mubr.bf16.gmra.mrb[0].mxu0 %v303
          %v435 = vpop.f32.mrb[0].mxu0
          %v436 = vadd.f32 0.0, %v435
          %v437 = vpop.f32.mrb[0].mxu0
          %v438 = vadd.f32 0.0, %v437
          %v439 = vpop.f32.mrb[0].mxu0
          %v440 = vadd.f32 0.0, %v439
          %v441 = vpop.f32.mrb[0].mxu0
          %v442 = vadd.f32 0.0, %v441
          %443 = vdwg.mxu0
          %v444 = vpack.c.bf16 %v440, %v436
          %v445 = vpack.c.bf16 %v442, %v438
          %446 = vst [vmem:[#allocation2] sm:$0xff] %v444
          %447 = vst [vmem:[#allocation2 + $0x8] sm:$0xff] %v445
        $region48: #{llama_cls_forward.1} parent=31 // pred_fallthru
          _
        %v448 = vld [vmem:[#allocation2] sm:$0xff]
        %v449 = vld [vmem:[#allocation2 + $0x8] sm:$0xff]
        %v450 = vld [vmem:[%s228] sm:$0xff]
        %v451 = vld [vmem:[%s228 + $0x8] sm:$0xff]
        %v452 = vld [vmem:[%s228 + $0x10] sm:$0xff]
        %v453 = vld [vmem:[%s228 + $0x18] sm:$0xff]
        %v454 = vld [vmem:[%s228 + $0x20] sm:$0xff]
        %v455 = vld [vmem:[%s228 + $0x28] sm:$0xff]
        %v456 = vld [vmem:[%s228 + $0x30] sm:$0xff]
        %v457 = vld [vmem:[%s228 + $0x38] sm:$0xff]
        %v458 = vld [vmem:[%s228 + $0x40] sm:$0xff]
        %v459 = vld [vmem:[%s228 + $0x48] sm:$0xff]
        %v460 = vld [vmem:[%s228 + $0x50] sm:$0xff]
        %v461 = vld [vmem:[%s228 + $0x58] sm:$0xff]
        %v462 = vld [vmem:[%s228 + $0x60] sm:$0xff]
        %v463 = vld [vmem:[%s228 + $0x68] sm:$0xff]
        %v464 = vld [vmem:[%s228 + $0x70] sm:$0xff]
        %v465 = vld [vmem:[%s228 + $0x78] sm:$0xff]
        %v466 = vld [vmem:[%s228 + $0x80] sm:$0xff]
        %v467 = vld [vmem:[%s228 + $0x88] sm:$0xff]
        %v468 = vld [vmem:[%s228 + $0x90] sm:$0xff]
        %v469 = vld [vmem:[%s228 + $0x98] sm:$0xff]
        %v470 = vld [vmem:[%s228 + $0xa0] sm:$0xff]
        %v471 = vld [vmem:[%s228 + $0xa8] sm:$0xff]
        %v472 = vld [vmem:[%s228 + $0xb0] sm:$0xff]
        %v473 = vld [vmem:[%s228 + $0xb8] sm:$0xff]
        %v474 = vld [vmem:[%s228 + $0xc0] sm:$0xff]
        %v475 = vld [vmem:[%s228 + $0xc8] sm:$0xff]
        %v476 = vld [vmem:[%s228 + $0xd0] sm:$0xff]
        %v477 = vld [vmem:[%s228 + $0xd8] sm:$0xff]
        %v478 = vld [vmem:[%s228 + $0xe0] sm:$0xff]
        %v479 = vld [vmem:[%s228 + $0xe8] sm:$0xff]
        %v480 = vld [vmem:[%s228 + $0xf0] sm:$0xff]
        %v481 = vld [vmem:[%s228 + $0xf8] sm:$0xff]
        %v482 = vld [vmem:[%s228 + $0x100] sm:$0xff]
        %v483 = vld [vmem:[%s228 + $0x108] sm:$0xff]
        %v484 = vld [vmem:[%s228 + $0x110] sm:$0xff]
        %v485 = vld [vmem:[%s228 + $0x118] sm:$0xff]
        %v486 = vld [vmem:[%s228 + $0x120] sm:$0xff]
        %v487 = vld [vmem:[%s228 + $0x128] sm:$0xff]
        %v488 = vld [vmem:[%s228 + $0x130] sm:$0xff]
        %v489 = vld [vmem:[%s228 + $0x138] sm:$0xff]
        %v490 = vld [vmem:[%s228 + $0x140] sm:$0xff]
        %v491 = vld [vmem:[%s228 + $0x148] sm:$0xff]
        %v492 = vld [vmem:[%s228 + $0x150] sm:$0xff]
        %v493 = vld [vmem:[%s228 + $0x158] sm:$0xff]
        %v494 = vld [vmem:[%s228 + $0x160] sm:$0xff]
        %v495 = vld [vmem:[%s228 + $0x168] sm:$0xff]
        %v496 = vld [vmem:[%s228 + $0x170] sm:$0xff]
        %v497 = vld [vmem:[%s228 + $0x178] sm:$0xff]
        %v498 = vld [vmem:[%s228 + $0x180] sm:$0xff]
        %v499 = vld [vmem:[%s228 + $0x188] sm:$0xff]
        %v500 = vld [vmem:[%s228 + $0x190] sm:$0xff]
        %v501 = vld [vmem:[%s228 + $0x198] sm:$0xff]
        %v502 = vld [vmem:[%s228 + $0x1a0] sm:$0xff]
        %v503 = vld [vmem:[%s228 + $0x1a8] sm:$0xff]
        %v504 = vld [vmem:[%s228 + $0x1b0] sm:$0xff]
        %v505 = vld [vmem:[%s228 + $0x1b8] sm:$0xff]
        %v506 = vld [vmem:[%s228 + $0x1c0] sm:$0xff]
        %v507 = vld [vmem:[%s228 + $0x1c8] sm:$0xff]
        %v508 = vld [vmem:[%s228 + $0x1d0] sm:$0xff]
        %v509 = vld [vmem:[%s228 + $0x1d8] sm:$0xff]
        %v510 = vld [vmem:[%s228 + $0x1e0] sm:$0xff]
        %v511 = vld [vmem:[%s228 + $0x1e8] sm:$0xff]
        %v512 = vld [vmem:[%s228 + $0x1f0] sm:$0xff]
        %v513 = vld [vmem:[%s228 + $0x1f8] sm:$0xff]
        %v578 = vunpack.c.l.b16 %v450
        %v579 = vunpack.c.h.b16 %v450
        %v580 = vunpack.c.l.b16 %v451
        %v581 = vunpack.c.h.b16 %v451
        %v582 = vunpack.c.l.b16 %v452
        %v583 = vunpack.c.h.b16 %v452
        %v584 = vunpack.c.l.b16 %v453
        %v585 = vunpack.c.h.b16 %v453
        %v586 = vunpack.c.l.b16 %v454
        %v587 = vunpack.c.h.b16 %v454
        %v588 = vunpack.c.l.b16 %v455
        %v589 = vunpack.c.h.b16 %v455
        %v590 = vunpack.c.l.b16 %v456
        %v591 = vunpack.c.h.b16 %v456
        %v592 = vunpack.c.l.b16 %v457
        %v593 = vunpack.c.h.b16 %v457
        %v594 = vunpack.c.l.b16 %v458
        %v595 = vunpack.c.h.b16 %v458
        %v596 = vunpack.c.l.b16 %v459
        %v597 = vunpack.c.h.b16 %v459
        %v598 = vunpack.c.l.b16 %v460
        %v599 = vunpack.c.h.b16 %v460
        %v600 = vunpack.c.l.b16 %v461
        %v601 = vunpack.c.h.b16 %v461
        %v602 = vunpack.c.l.b16 %v462
        %v603 = vunpack.c.h.b16 %v462
        %v604 = vunpack.c.l.b16 %v463
        %v605 = vunpack.c.h.b16 %v463
        %v606 = vunpack.c.l.b16 %v464
        %v607 = vunpack.c.h.b16 %v464
        %v608 = vunpack.c.l.b16 %v465
        %v609 = vunpack.c.h.b16 %v465
        %v610 = vunpack.c.l.b16 %v466
        %v611 = vunpack.c.h.b16 %v466
        %v612 = vunpack.c.l.b16 %v467
        %v613 = vunpack.c.h.b16 %v467
        %v614 = vunpack.c.l.b16 %v468
        %v615 = vunpack.c.h.b16 %v468
        %v616 = vunpack.c.l.b16 %v469
        %v617 = vunpack.c.h.b16 %v469
        %v618 = vunpack.c.l.b16 %v470
        %v619 = vunpack.c.h.b16 %v470
        %v620 = vunpack.c.l.b16 %v471
        %v621 = vunpack.c.h.b16 %v471
        %v622 = vunpack.c.l.b16 %v472
        %v623 = vunpack.c.h.b16 %v472
        %v624 = vunpack.c.l.b16 %v473
        %v625 = vunpack.c.h.b16 %v473
        %v626 = vunpack.c.l.b16 %v474
        %v627 = vunpack.c.h.b16 %v474
        %v628 = vunpack.c.l.b16 %v475
        %v629 = vunpack.c.h.b16 %v475
        %v630 = vunpack.c.l.b16 %v476
        %v631 = vunpack.c.h.b16 %v476
        %v632 = vunpack.c.l.b16 %v477
        %v633 = vunpack.c.h.b16 %v477
        %v634 = vunpack.c.l.b16 %v478
        %v635 = vunpack.c.h.b16 %v478
        %v636 = vunpack.c.l.b16 %v479
        %v637 = vunpack.c.h.b16 %v479
        %v638 = vunpack.c.l.b16 %v480
        %v639 = vunpack.c.h.b16 %v480
        %v640 = vunpack.c.l.b16 %v481
        %v641 = vunpack.c.h.b16 %v481
        %v642 = vunpack.c.l.b16 %v482
        %v643 = vunpack.c.h.b16 %v482
        %v644 = vunpack.c.l.b16 %v483
        %v645 = vunpack.c.h.b16 %v483
        %v646 = vunpack.c.l.b16 %v484
        %v647 = vunpack.c.h.b16 %v484
        %v648 = vunpack.c.l.b16 %v485
        %v649 = vunpack.c.h.b16 %v485
        %v650 = vunpack.c.l.b16 %v486
        %v651 = vunpack.c.h.b16 %v486
        %v652 = vunpack.c.l.b16 %v487
        %v653 = vunpack.c.h.b16 %v487
        %v654 = vunpack.c.l.b16 %v488
        %v655 = vunpack.c.h.b16 %v488
        %v656 = vunpack.c.l.b16 %v489
        %v657 = vunpack.c.h.b16 %v489
        %v658 = vunpack.c.l.b16 %v490
        %v659 = vunpack.c.h.b16 %v490
        %v660 = vunpack.c.l.b16 %v491
        %v661 = vunpack.c.h.b16 %v491
        %v662 = vunpack.c.l.b16 %v492
        %v663 = vunpack.c.h.b16 %v492
        %v664 = vunpack.c.l.b16 %v493
        %v665 = vunpack.c.h.b16 %v493
        %v666 = vunpack.c.l.b16 %v494
        %v667 = vunpack.c.h.b16 %v494
        %v668 = vunpack.c.l.b16 %v495
        %v669 = vunpack.c.h.b16 %v495
        %v670 = vunpack.c.l.b16 %v496
        %v671 = vunpack.c.h.b16 %v496
        %v672 = vunpack.c.l.b16 %v497
        %v673 = vunpack.c.h.b16 %v497
        %v674 = vunpack.c.l.b16 %v498
        %v675 = vunpack.c.h.b16 %v498
        %v676 = vunpack.c.l.b16 %v499
        %v677 = vunpack.c.h.b16 %v499
        %v678 = vunpack.c.l.b16 %v500
        %v679 = vunpack.c.h.b16 %v500
        %v680 = vunpack.c.l.b16 %v501
        %v681 = vunpack.c.h.b16 %v501
        %v682 = vunpack.c.l.b16 %v502
        %v683 = vunpack.c.h.b16 %v502
        %v684 = vunpack.c.l.b16 %v503
        %v685 = vunpack.c.h.b16 %v503
        %v686 = vunpack.c.l.b16 %v504
        %v687 = vunpack.c.h.b16 %v504
        %v688 = vunpack.c.l.b16 %v505
        %v689 = vunpack.c.h.b16 %v505
        %v690 = vunpack.c.l.b16 %v506
        %v691 = vunpack.c.h.b16 %v506
        %v692 = vunpack.c.l.b16 %v507
        %v693 = vunpack.c.h.b16 %v507
        %v694 = vunpack.c.l.b16 %v508
        %v695 = vunpack.c.h.b16 %v508
        %v696 = vunpack.c.l.b16 %v509
        %v697 = vunpack.c.h.b16 %v509
        %v698 = vunpack.c.l.b16 %v510
        %v699 = vunpack.c.h.b16 %v510
        %v700 = vunpack.c.l.b16 %v511
        %v701 = vunpack.c.h.b16 %v511
        %v702 = vunpack.c.l.b16 %v512
        %v703 = vunpack.c.h.b16 %v512
        %v704 = vunpack.c.l.b16 %v513
        %v705 = vunpack.c.h.b16 %v513
        %v706 = vpack.c.b16 %v580, %v578
        %v707 = vpack.c.b16 %v581, %v579
        %v708 = vpack.c.b16 %v584, %v582
        %v709 = vpack.c.b16 %v585, %v583
        %v710 = vpack.c.b16 %v588, %v586
        %v711 = vpack.c.b16 %v589, %v587
        %v712 = vpack.c.b16 %v592, %v590
        %v713 = vpack.c.b16 %v593, %v591
        %v714 = vpack.c.b16 %v596, %v594
        %v715 = vpack.c.b16 %v597, %v595
        %v716 = vpack.c.b16 %v600, %v598
        %v717 = vpack.c.b16 %v601, %v599
        %v718 = vpack.c.b16 %v604, %v602
        %v719 = vpack.c.b16 %v605, %v603
        %v720 = vpack.c.b16 %v608, %v606
        %v721 = vpack.c.b16 %v609, %v607
        %v722 = vpack.c.b16 %v612, %v610
        %v723 = vpack.c.b16 %v613, %v611
        %v724 = vpack.c.b16 %v616, %v614
        %v725 = vpack.c.b16 %v617, %v615
        %v726 = vpack.c.b16 %v620, %v618
        %v727 = vpack.c.b16 %v621, %v619
        %v728 = vpack.c.b16 %v624, %v622
        %v729 = vpack.c.b16 %v625, %v623
        %v730 = vpack.c.b16 %v628, %v626
        %v731 = vpack.c.b16 %v629, %v627
        %v732 = vpack.c.b16 %v632, %v630
        %v733 = vpack.c.b16 %v633, %v631
        %v734 = vpack.c.b16 %v636, %v634
        %v735 = vpack.c.b16 %v637, %v635
        %v736 = vpack.c.b16 %v640, %v638
        %v737 = vpack.c.b16 %v641, %v639
        %v738 = vpack.c.b16 %v644, %v642
        %v739 = vpack.c.b16 %v645, %v643
        %v740 = vpack.c.b16 %v648, %v646
        %v741 = vpack.c.b16 %v649, %v647
        %v742 = vpack.c.b16 %v652, %v650
        %v743 = vpack.c.b16 %v653, %v651
        %v744 = vpack.c.b16 %v656, %v654
        %v745 = vpack.c.b16 %v657, %v655
        %v746 = vpack.c.b16 %v660, %v658
        %v747 = vpack.c.b16 %v661, %v659
        %v748 = vpack.c.b16 %v664, %v662
        %v749 = vpack.c.b16 %v665, %v663
        %v750 = vpack.c.b16 %v668, %v666
        %v751 = vpack.c.b16 %v669, %v667
        %v752 = vpack.c.b16 %v672, %v670
        %v753 = vpack.c.b16 %v673, %v671
        %v754 = vpack.c.b16 %v676, %v674
        %v755 = vpack.c.b16 %v677, %v675
        %v756 = vpack.c.b16 %v680, %v678
        %v757 = vpack.c.b16 %v681, %v679
        %v758 = vpack.c.b16 %v684, %v682
        %v759 = vpack.c.b16 %v685, %v683
        %v760 = vpack.c.b16 %v688, %v686
        %v761 = vpack.c.b16 %v689, %v687
        %v762 = vpack.c.b16 %v692, %v690
        %v763 = vpack.c.b16 %v693, %v691
        %v764 = vpack.c.b16 %v696, %v694
        %v765 = vpack.c.b16 %v697, %v695
        %v766 = vpack.c.b16 %v700, %v698
        %v767 = vpack.c.b16 %v701, %v699
        %v768 = vpack.c.b16 %v704, %v702
        %v769 = vpack.c.b16 %v705, %v703
        %834 = vmatprep.subr.bf16.mxu0 %v707
        %835 = vmatpush1.bf16.xpose.msra.mxu0 %v706
        %836 = vmatprep.subr.bf16.mxu0 %v709
        %837 = vmatpush1.bf16.xpose.msra.mxu0 %v708
        %838 = vmatprep.subr.bf16.mxu0 %v711
        %839 = vmatpush1.bf16.xpose.msra.mxu0 %v710
        %840 = vmatprep.subr.bf16.mxu0 %v713
        %841 = vmatpush1.bf16.xpose.msra.mxu0 %v712
        %842 = vmatprep.subr.bf16.mxu0 %v715
        %843 = vmatpush1.bf16.xpose.msra.mxu0 %v714
        %844 = vmatprep.subr.bf16.mxu0 %v717
        %845 = vmatpush1.bf16.xpose.msra.mxu0 %v716
        %846 = vmatprep.subr.bf16.mxu0 %v719
        %847 = vmatpush1.bf16.xpose.msra.mxu0 %v718
        %848 = vmatprep.subr.bf16.mxu0 %v721
        %849 = vmatpush1.bf16.xpose.msra.mxu0 %v720
        %850 = vmatprep.subr.bf16.mxu0 %v723
        %851 = vmatpush1.bf16.xpose.msra.mxu0 %v722
        %852 = vmatprep.subr.bf16.mxu0 %v725
        %853 = vmatpush1.bf16.xpose.msra.mxu0 %v724
        %854 = vmatprep.subr.bf16.mxu0 %v727
        %855 = vmatpush1.bf16.xpose.msra.mxu0 %v726
        %856 = vmatprep.subr.bf16.mxu0 %v729
        %857 = vmatpush1.bf16.xpose.msra.mxu0 %v728
        %858 = vmatprep.subr.bf16.mxu0 %v731
        %859 = vmatpush1.bf16.xpose.msra.mxu0 %v730
        %860 = vmatprep.subr.bf16.mxu0 %v733
        %861 = vmatpush1.bf16.xpose.msra.mxu0 %v732
        %862 = vmatprep.subr.bf16.mxu0 %v735
        %863 = vmatpush1.bf16.xpose.msra.mxu0 %v734
        %864 = vmatprep.subr.bf16.mxu0 %v737
        %865 = vmatpush1.bf16.xpose.msra.mxu0 %v736
        %866 = vmatprep.mubr.bf16.mxu0 %v449
        %867 = vmatmul.mubr.bf16.gmra.mrb[0].mxu0 %v448
        %v868 = vpop.f32.mrb[0].mxu0
        %v869 = vadd.f32 0.0, %v868
        %v870 = vpop.f32.mrb[0].mxu0
        %v871 = vadd.f32 0.0, %v870
        %v872 = vpop.f32.mrb[0].mxu0
        %v873 = vadd.f32 0.0, %v872
        %v874 = vpop.f32.mrb[0].mxu0
        %v875 = vadd.f32 0.0, %v874
        %876 = vdwg.mxu0
        %877 = vmatprep.subr.bf16.mxu0 %v739
        %878 = vmatpush1.bf16.xpose.msra.mxu0 %v738
        %879 = vmatprep.subr.bf16.mxu0 %v741
        %880 = vmatpush1.bf16.xpose.msra.mxu0 %v740
        %881 = vmatprep.subr.bf16.mxu0 %v743
        %882 = vmatpush1.bf16.xpose.msra.mxu0 %v742
        %883 = vmatprep.subr.bf16.mxu0 %v745
        %884 = vmatpush1.bf16.xpose.msra.mxu0 %v744
        %885 = vmatprep.subr.bf16.mxu0 %v747
        %886 = vmatpush1.bf16.xpose.msra.mxu0 %v746
        %887 = vmatprep.subr.bf16.mxu0 %v749
        %888 = vmatpush1.bf16.xpose.msra.mxu0 %v748
        %889 = vmatprep.subr.bf16.mxu0 %v751
        %890 = vmatpush1.bf16.xpose.msra.mxu0 %v750
        %891 = vmatprep.subr.bf16.mxu0 %v753
        %892 = vmatpush1.bf16.xpose.msra.mxu0 %v752
        %893 = vmatprep.subr.bf16.mxu0 %v755
        %894 = vmatpush1.bf16.xpose.msra.mxu0 %v754
        %895 = vmatprep.subr.bf16.mxu0 %v757
        %896 = vmatpush1.bf16.xpose.msra.mxu0 %v756
        %897 = vmatprep.subr.bf16.mxu0 %v759
        %898 = vmatpush1.bf16.xpose.msra.mxu0 %v758
        %899 = vmatprep.subr.bf16.mxu0 %v761
        %900 = vmatpush1.bf16.xpose.msra.mxu0 %v760
        %901 = vmatprep.subr.bf16.mxu0 %v763
        %902 = vmatpush1.bf16.xpose.msra.mxu0 %v762
        %903 = vmatprep.subr.bf16.mxu0 %v765
        %904 = vmatpush1.bf16.xpose.msra.mxu0 %v764
        %905 = vmatprep.subr.bf16.mxu0 %v767
        %906 = vmatpush1.bf16.xpose.msra.mxu0 %v766
        %907 = vmatprep.subr.bf16.mxu0 %v769
        %908 = vmatpush1.bf16.xpose.msra.mxu0 %v768
        %909 = vmatprep.mubr.bf16.mxu0 %v449
        %910 = vmatmul.mubr.bf16.gmra.mrb[0].mxu0 %v448
        %v911 = vpop.f32.mrb[0].mxu0
        %v912 = vadd.f32 0.0, %v911
        %v913 = vpop.f32.mrb[0].mxu0
        %v914 = vadd.f32 0.0, %v913
        %v915 = vpop.f32.mrb[0].mxu0
        %v916 = vadd.f32 0.0, %v915
        %v917 = vpop.f32.mrb[0].mxu0
        %v918 = vadd.f32 0.0, %v917
        %919 = vdwg.mxu0
        %v920 = vpack.c.bf16 %v873, %v869
        %v921 = vpack.c.bf16 %v875, %v871
        %v922 = vpack.c.bf16 %v916, %v912
        %v923 = vpack.c.bf16 %v918, %v914
        %v928 = vunpack.c.l.b16 %v920
        %v929 = vunpack.c.l.b16 %v921
        %v930 = vunpack.c.l.b16 %v922
        %v931 = vunpack.c.l.b16 %v923
        %v932 = vunpack.c.h.b16 %v920
        %v933 = vunpack.c.h.b16 %v921
        %v934 = vunpack.c.h.b16 %v922
        %v935 = vunpack.c.h.b16 %v923
        %v936 = vpack.c.b16 %v929, %v928
        %v937 = vpack.c.b16 %v931, %v930
        %v938 = vpack.c.b16 %v933, %v932
        %v939 = vpack.c.b16 %v935, %v934
        %944 = vst [vmem:[%s255] sm:$0xff] %v936
        %945 = vst [vmem:[%s255 + $0x8] sm:$0xff] %v937
        %946 = vst [vmem:[%s255 + $0x10] sm:$0xff] %v938
        %947 = vst [vmem:[%s255 + $0x18] sm:$0xff] %v939
        %s948 = sand.u32 %s116, 1
        %s949 = scalar_lea.sflag [#allocation5], %s948
        %s950 = sand.u32 %s116, 1
        %s951 = smul.addr %s950, 32
        %s952 = scalar_lea.vmem [#allocation9], %s951
        // Predicated region
        $region49: #{llama_cls_forward.1} parent=31 // pred_check
          %p953 = pneg %p126
        $region50: #{llama_cls_forward.1} parent=31 // pred_check_branch
          %955 = sbr.rel (%p953) target = $region52
        $region51: #{llama_cls_forward.1} parent=31 // pred_region
          %s956 = smul.u32 2, %s25
          %s957 = smul.u32 4, %s26
          %s959 = ssub.s32 512, 512
          %960 = vsyncadd %s949, %s959
          %s961 = smul.addr %s956, 8
          %s962 = sadd.s32 %s957, %s961
          %s963 = smul.addr %s962, 64
          %s964 = scalar_lea.hbm %s3, %s963
          %s965 = sshll.u32 %s952, 4
          %s966 = int_to_ptr.vmem [resolvable:$true] %s965
          %971 = dma.vmem_to_hbm [thread:$0]  %s966, 512, %s964, %s949, 256, 512, 16
        $region52: #{llama_cls_forward.1} parent=31 // pred_fallthru
          _
      $region32: #{llama_cls_forward.1} parent=5 // pred_fallthru
        _
      %p972 = scmp.le.s32.totalorder 2, %s16
      // Predicated region
      $region53: #{llama_cls_forward.1} parent=5 // pred_check
        %p973 = pneg %p972
      $region54: #{llama_cls_forward.1} parent=5 // pred_check_branch
        %975 = sbr.rel (%p973) target = $region56
      $region55: #{llama_cls_forward.1} parent=5 // pred_region
        %s976 = ssub.s32 %s16, 2
        // Predicated region
        $region57: #{llama_cls_forward.1} parent=55 // pred_check
          %p977 = pneg %p132
        $region58: #{llama_cls_forward.1} parent=55 // pred_check_branch
          %979 = sbr.rel (%p977) target = $region60
        $region59: #{llama_cls_forward.1} parent=55 // pred_region
          %s980 = sand.u32 %s117, 1
          %s981 = scalar_lea.sflag [#allocation5], %s980
          %s982 = sand.u32 %s117, 1
          %s983 = smul.addr %s982, 32
          %s984 = scalar_lea.vmem [#allocation9], %s983
          %985 = dma.done %s981, 512
        $region60: #{llama_cls_forward.1} parent=55 // pred_fallthru
          _
      $region56: #{llama_cls_forward.1} parent=5 // pred_fallthru
        _
    $region6: #{llama_cls_forward.1} parent=1 // loop_footer
      %s20 = sadd.s32 1, %s16
    $region7: #{llama_cls_forward.1} parent=1 // loop_footer_branch
      %15 = sbr.rel target = $region3
    $region8: #{llama_cls_forward.1} parent=1 // loop_exit
      _
    %986 = vsyncpa [#allocation4], 1
    %s987 = scalar_lea.sflag [#allocation4], 1
    %988 = vsyncpa %s987, 1
    %989 = vsyncpa [#allocation7], 1
    %990 = vsyncpa [#allocation5], 1
    %s991 = scalar_lea.sflag [#allocation5], 1
    %992 = vsyncpa %s991, 1

</llo_original>
